<compile_context>
chip_gen: v5e
topology: v5e:2x2
jax: 0.10.0
libtpu: 0.0.40
codegen_flags: <defaults>
</compile_context>

<pallas_src>
import jax
import jax.numpy as jnp
from jax.experimental import pallas as pl
from jax.experimental.pallas import tpu as pltpu


# ----------------------------------------------------------------------------
# Fused bidirectional-LSTM + decoder kernel (single invocation, no grid).
# ----------------------------------------------------------------------------
def make_fused_rnn(T, B, H, O):
    """Builds a pallas_call for fixed (T, B, H, O)."""

    def kernel(xcat_ref,     # (T*B, 2H) f32: row t*B+b = [x_emb(t,b) | x_emb(T-1-t,b)]
               wih_ref,      # (2H, 8H)  f32 block-structured input weight (g cols x2)
               whh_ref,      # (2H, 8H)  f32 block-structured recurrent weight (g cols x2)
               bias_ref,     # (1, 8H)   f32 folded bias, interleaved layout (g cols x2)
               wdec_f_ref,   # (H, O)    f32 decoder weight, fwd-hidden half
               wdec_b_ref,   # (H, O)    f32 decoder weight, bwd-hidden half
               bdec_ref,     # (1, O)    f32 decoder bias
               o_ref):       # (T*B, O)  f32 logits, time-major rows
        # ---- Prologue: hoisted input projection for BOTH directions (one MXU matmul).
        # Row block t of gx holds the fwd x-gates at time t and the bwd x-gates at
        # time T-1-t, already in the interleaved per-gate column layout.
        gx = (jnp.dot(xcat_ref[...], wih_ref[...],
                      preferred_element_type=jnp.float32) + bias_ref[...])
        whh = whh_ref[...]

        h = jnp.zeros((B, 2 * H), jnp.float32)   # [h_fwd | h_bwd]
        c = jnp.zeros((B, 2 * H), jnp.float32)   # [c_fwd | c_bwd]
        hs = []

        # ---- Serial recurrence, fully unrolled (T is small and static).  One fused
        # recurrent matmul + one fused sigmoid + one tanh per step; the whole working
        # set (h, c, gx, whh) stays in vregs.
        for t in range(T):
            gates = gx[t * B:(t + 1) * B, :] + jnp.dot(
                h, whh, preferred_element_type=jnp.float32)          # (B, 8H)
            s = jax.nn.sigmoid(gates)            # single fused sigmoid over all gates
            i = s[:, 0 * H:2 * H]                # [i_f | i_b]
            f = s[:, 2 * H:4 * H]                # [f_f | f_b]
            g = 2.0 * s[:, 4 * H:6 * H] - 1.0    # tanh(z) = 2*sigmoid(2z) - 1 (pre-scaled)
            o = s[:, 6 * H:8 * H]                # [o_f | o_b]
            c = f * c + i * g
            h = o * jnp.tanh(c)
            hs.append(h)

        # ---- Epilogue: time-align the bwd hiddens (bwd state at loop step s is the
        # output for time T-1-s), then fused decoder and one contiguous slab store.
        hid_f = jnp.concatenate([hs[t][:, 0:H] for t in range(T)], axis=0)          # (T*B, H)
        hid_b = jnp.concatenate([hs[T - 1 - t][:, H:2 * H] for t in range(T)], axis=0)
        o_ref[...] = (
            jnp.dot(hid_f, wdec_f_ref[...], preferred_element_type=jnp.float32)
            + jnp.dot(hid_b, wdec_b_ref[...], preferred_element_type=jnp.float32)
            + bdec_ref[...]).astype(o_ref.dtype)

    vmem = pl.BlockSpec(memory_space=pltpu.MemorySpace.VMEM)
    return pl.pallas_call(
        kernel,
        out_shape=jax.ShapeDtypeStruct((T * B, O), jnp.float32),
        in_specs=[vmem] * 7,
        out_specs=vmem,
    )


# ----------------------------------------------------------------------------
# One-time weight packing (hoisted out of the per-call jitted path).
# ----------------------------------------------------------------------------
def prepare_weights(params):
    H = params["emb"].shape[1]
    O = params["w_dec"].shape[0]
    Z = jnp.zeros((H, H), jnp.float32)

    def gate_blocks(w, scale_g):
        # w: (4H, in) PyTorch layout, gate rows ordered [i; f; g; o].  Returns the four
        # transposed (in, H) column blocks, with the g block pre-scaled for the
        # fused-sigmoid identity.
        wT = w.T.astype(jnp.float32)
        return (wT[:, 0:H], wT[:, H:2 * H],
                scale_g * wT[:, 2 * H:3 * H], wT[:, 3 * H:4 * H])

    # Input weight: rows 0:H act on x(t) (fwd), rows H:2H act on x(T-1-t) (bwd);
    # gate columns interleaved [i_f i_b f_f f_b g_f g_b o_f o_b].
    i_f, f_f, g_f, o_f = gate_blocks(params["w_ih_f"], 2.0)
    i_b, f_b, g_b, o_b = gate_blocks(params["w_ih_b"], 2.0)
    wih_blk = jnp.concatenate([
        jnp.concatenate([i_f, Z, f_f, Z, g_f, Z, o_f, Z], axis=1),
        jnp.concatenate([Z, i_b, Z, f_b, Z, g_b, Z, o_b], axis=1)], axis=0)   # (2H, 8H)

    # Recurrent weight: rows 0:H act on h_fwd, rows H:2H act on h_bwd.
    ri_f, rf_f, rg_f, ro_f = gate_blocks(params["w_hh_f"], 2.0)
    ri_b, rf_b, rg_b, ro_b = gate_blocks(params["w_hh_b"], 2.0)
    whh_blk = jnp.concatenate([
        jnp.concatenate([ri_f, Z, rf_f, Z, rg_f, Z, ro_f, Z], axis=1),
        jnp.concatenate([Z, ri_b, Z, rf_b, Z, rg_b, Z, ro_b], axis=1)], axis=0)  # (2H, 8H)

    def bias_blocks(b, scale_g):
        b = b.reshape(1, 4 * H).astype(jnp.float32)
        return (b[:, 0:H], b[:, H:2 * H],
                scale_g * b[:, 2 * H:3 * H], b[:, 3 * H:4 * H])

    bi_f, bf_f, bg_f, bo_f = bias_blocks(params["b_ih_f"] + params["b_hh_f"], 2.0)
    bi_b, bf_b, bg_b, bo_b = bias_blocks(params["b_ih_b"] + params["b_hh_b"], 2.0)
    bias = jnp.concatenate([bi_f, bi_b, bf_f, bf_b, bg_f, bg_b, bo_f, bo_b], axis=1)  # (1, 8H)

    wdecT = params["w_dec"].T.astype(jnp.float32)   # (2H, O)
    return {
        "emb": params["emb"].astype(jnp.float32),
        "wih_blk": wih_blk,
        "whh_blk": whh_blk,
        "bias": bias,
        "wdec_f": wdecT[:H],
        "wdec_b": wdecT[H:],
        "b_dec": params["b_dec"].reshape(1, O).astype(jnp.float32),
    }


# ----------------------------------------------------------------------------
# Full forward pass (inference path: target_labels is None -> return logits).
# ----------------------------------------------------------------------------
def rnn_forward(inp, packed):
    """inp: int32 (B, T). packed: output of prepare_weights. Returns (B, T, O) logits."""
    B, T = inp.shape
    H = packed["emb"].shape[1]
    O = packed["wdec_f"].shape[1]

    # Embedding gather + time-major layout (glue; the hot path is in the kernel).
    x = packed["emb"][inp]                                       # (B, T, H)
    x_tb = jnp.transpose(x, (1, 0, 2))                           # (T, B, H)
    # Row block t carries x(t) for the fwd half and x(T-1-t) for the bwd half so the
    # kernel's single prologue matmul yields time-aligned gates for both directions.
    x_cat = jnp.concatenate([x_tb, x_tb[::-1]], axis=-1).reshape(T * B, 2 * H)

    logits2d = make_fused_rnn(T, B, H, O)(
        x_cat, packed["wih_blk"], packed["whh_blk"], packed["bias"],
        packed["wdec_f"], packed["wdec_b"], packed["b_dec"])     # (T*B, O)

    return jnp.transpose(logits2d.reshape(T, B, O), (1, 0, 2))   # (B, T, O)


# ----------------------------------------------------------------------------
# Pure-JAX reference (mirrors the PyTorch module) for correctness validation.
# ----------------------------------------------------------------------------
def rnn_reference(inp, params):
    B, T = inp.shape
    H = params["emb"].shape[1]
    x = params["emb"][inp]                                       # (B, T, H)

    def step(h, c, xt, w_ih, w_hh, b):
        gates = xt @ w_ih.T + h @ w_hh.T + b                     # (B, 4H), order i,f,g,o
        i = jax.nn.sigmoid(gates[:, 0:H])
        f = jax.nn.sigmoid(gates[:, H:2 * H])
        g = jnp.tanh(gates[:, 2 * H:3 * H])
        o = jax.nn.sigmoid(gates[:, 3 * H:4 * H])
        c = f * c + i * g
        return o * jnp.tanh(c), c

    b_f = params["b_ih_f"] + params["b_hh_f"]
    b_b = params["b_ih_b"] + params["b_hh_b"]

    h = jnp.zeros((B, H)); c = jnp.zeros((B, H)); outs_f = []
    for t in range(T):
        h, c = step(h, c, x[:, t], params["w_ih_f"], params["w_hh_f"], b_f)
        outs_f.append(h)
    h = jnp.zeros((B, H)); c = jnp.zeros((B, H)); outs_b = [None] * T
    for t in range(T - 1, -1, -1):
        h, c = step(h, c, x[:, t], params["w_ih_b"], params["w_hh_b"], b_b)
        outs_b[t] = h

    out = jnp.concatenate([jnp.stack(outs_f, 1), jnp.stack(outs_b, 1)], axis=-1)  # (B,T,2H)
    return out @ params["w_dec"].T + params["b_dec"]


# ----------------------------------------------------------------------------
# Deterministic parameter init (matches nn.Module shapes).
# ----------------------------------------------------------------------------
def init_params(key, input_size, hidden_size, output_size):
    ks = jax.random.split(key, 11)
    H = hidden_size
    s = 0.1
    return {
        "emb":    jax.random.normal(ks[0], (input_size, H), jnp.float32) * s,
        # forward direction
        "w_ih_f": jax.random.normal(ks[1], (4 * H, H), jnp.float32) * s,
        "w_hh_f": jax.random.normal(ks[2], (4 * H, H), jnp.float32) * s,
        "b_ih_f": jax.random.normal(ks[3], (4 * H,), jnp.float32) * s,
        "b_hh_f": jax.random.normal(ks[4], (4 * H,), jnp.float32) * s,
        # reverse direction
        "w_ih_b": jax.random.normal(ks[5], (4 * H, H), jnp.float32) * s,
        "w_hh_b": jax.random.normal(ks[6], (4 * H, H), jnp.float32) * s,
        "b_ih_b": jax.random.normal(ks[7], (4 * H,), jnp.float32) * s,
        "b_hh_b": jax.random.normal(ks[8], (4 * H,), jnp.float32) * s,
        # decoder Linear(2H, output_size)
        "w_dec":  jax.random.normal(ks[9], (output_size, 2 * H), jnp.float32) * s,
        "b_dec":  jax.random.normal(ks[10], (output_size,), jnp.float32) * s,
    }


if __name__ == "__main__":
    input_size = 64     # vocab
    hidden_size = 32
    output_size = 16
    B, T = 2, 8

    key = jax.random.PRNGKey(0)
    pkey, ikey = jax.random.split(key)
    params = init_params(pkey, input_size, hidden_size, output_size)
    inp = jax.random.randint(ikey, (B, T), 0, input_size, dtype=jnp.int32)

    # One-time weight packing, kept out of the per-call hot path.
    packed = prepare_weights(params)
    packed = jax.block_until_ready(packed)

    logits = jax.jit(rnn_forward)(inp, packed)
    logits = jax.block_until_ready(logits)

    assert logits.shape == (B, T, output_size), logits.shape
    assert bool(jnp.all(jnp.isfinite(logits)))

    # Validate against the pure-JAX (PyTorch-equivalent) reference.
    ref = jax.block_until_ready(rnn_reference(inp, params))
    assert bool(jnp.allclose(logits, ref, atol=1e-4, rtol=1e-4)), (
        float(jnp.max(jnp.abs(logits - ref))))

    print("KERNEL_OK")
</pallas_src>

<mosaic_0001>
module attributes {stable_mosaic.version = 11 : i64} {
  func.func @kernel(%arg0: memref<16x64xf32, #tpu.memory_space<vmem>>, %arg1: memref<64x256xf32, #tpu.memory_space<vmem>>, %arg2: memref<64x256xf32, #tpu.memory_space<vmem>>, %arg3: memref<1x256xf32, #tpu.memory_space<vmem>>, %arg4: memref<32x16xf32, #tpu.memory_space<vmem>>, %arg5: memref<32x16xf32, #tpu.memory_space<vmem>>, %arg6: memref<1x16xf32, #tpu.memory_space<vmem>>, %arg7: memref<16x16xf32, #tpu.memory_space<vmem>>) attributes {dimension_semantics = [], scalar_prefetch = 0 : i64, scratch_operands = 0 : i64, tpu.core_type = #tpu.core_type<tc>} {
    %c0 = arith.constant 0 : index
    %c0_0 = arith.constant 0 : index
    %0 = vector.load %arg0[%c0, %c0_0] : memref<16x64xf32, #tpu.memory_space<vmem>>, vector<16x64xf32>
    %c0_1 = arith.constant 0 : index
    %c0_2 = arith.constant 0 : index
    %1 = vector.load %arg1[%c0_1, %c0_2] : memref<64x256xf32, #tpu.memory_space<vmem>>, vector<64x256xf32>
    %cst = arith.constant dense<0.000000e+00> : vector<16x256xf32>
    %2 = tpu.matmul %0, %1, %cst {dimension_numbers = #tpu.dot_dimension_numbers<[1], [0], [0], [1], [0, 0, 1, 1], [], []>} : vector<16x64xf32>, vector<64x256xf32>, vector<16x256xf32> -> vector<16x256xf32>
    %c0_3 = arith.constant 0 : index
    %c0_4 = arith.constant 0 : index
    %3 = vector.load %arg3[%c0_3, %c0_4] : memref<1x256xf32, #tpu.memory_space<vmem>>, vector<1x256xf32>
    %4 = vector.broadcast %3 : vector<1x256xf32> to vector<16x256xf32>
    %5 = arith.addf %2, %4 : vector<16x256xf32>
    %c0_5 = arith.constant 0 : index
    %c0_6 = arith.constant 0 : index
    %6 = vector.load %arg2[%c0_5, %c0_6] : memref<64x256xf32, #tpu.memory_space<vmem>>, vector<64x256xf32>
    %cst_7 = arith.constant 0.000000e+00 : f32
    %7 = vector.broadcast %cst_7 : f32 to vector<2x64xf32>
    %cst_8 = arith.constant 0.000000e+00 : f32
    %8 = vector.broadcast %cst_8 : f32 to vector<2x64xf32>
    %9 = vector.extract_strided_slice %5 {offsets = [0, 0], sizes = [2, 256], strides = [1, 1]} : vector<16x256xf32> to vector<2x256xf32>
    %cst_9 = arith.constant dense<0.000000e+00> : vector<2x256xf32>
    %10 = tpu.matmul %7, %6, %cst_9 {dimension_numbers = #tpu.dot_dimension_numbers<[1], [0], [0], [1], [0, 0, 1, 1], [], []>} : vector<2x64xf32>, vector<64x256xf32>, vector<2x256xf32> -> vector<2x256xf32>
    %11 = arith.addf %9, %10 : vector<2x256xf32>
    %12 = arith.negf %11 : vector<2x256xf32>
    %13 = math.exp %12 : vector<2x256xf32>
    %cst_10 = arith.constant 1.000000e+00 : f32
    %14 = vector.broadcast %cst_10 : f32 to vector<2x256xf32>
    %15 = arith.addf %14, %13 : vector<2x256xf32>
    %16 = arith.divf %14, %15 : vector<2x256xf32>
    %17 = vector.extract_strided_slice %16 {offsets = [0, 0], sizes = [2, 64], strides = [1, 1]} : vector<2x256xf32> to vector<2x64xf32>
    %18 = vector.extract_strided_slice %16 {offsets = [0, 64], sizes = [2, 64], strides = [1, 1]} : vector<2x256xf32> to vector<2x64xf32>
    %19 = vector.extract_strided_slice %16 {offsets = [0, 128], sizes = [2, 64], strides = [1, 1]} : vector<2x256xf32> to vector<2x64xf32>
    %cst_11 = arith.constant 2.000000e+00 : f32
    %20 = vector.broadcast %cst_11 : f32 to vector<2x64xf32>
    %21 = arith.mulf %20, %19 : vector<2x64xf32>
    %cst_12 = arith.constant 1.000000e+00 : f32
    %22 = vector.broadcast %cst_12 : f32 to vector<2x64xf32>
    %23 = arith.subf %21, %22 : vector<2x64xf32>
    %24 = vector.extract_strided_slice %16 {offsets = [0, 192], sizes = [2, 64], strides = [1, 1]} : vector<2x256xf32> to vector<2x64xf32>
    %25 = arith.mulf %18, %8 : vector<2x64xf32>
    %26 = arith.mulf %17, %23 : vector<2x64xf32>
    %27 = arith.addf %25, %26 : vector<2x64xf32>
    %28 = math.tanh %27 : vector<2x64xf32>
    %29 = arith.mulf %24, %28 : vector<2x64xf32>
    %30 = vector.extract_strided_slice %5 {offsets = [2, 0], sizes = [2, 256], strides = [1, 1]} : vector<16x256xf32> to vector<2x256xf32>
    %cst_13 = arith.constant dense<0.000000e+00> : vector<2x256xf32>
    %31 = tpu.matmul %29, %6, %cst_13 {dimension_numbers = #tpu.dot_dimension_numbers<[1], [0], [0], [1], [0, 0, 1, 1], [], []>} : vector<2x64xf32>, vector<64x256xf32>, vector<2x256xf32> -> vector<2x256xf32>
    %32 = arith.addf %30, %31 : vector<2x256xf32>
    %33 = arith.negf %32 : vector<2x256xf32>
    %34 = math.exp %33 : vector<2x256xf32>
    %cst_14 = arith.constant 1.000000e+00 : f32
    %35 = vector.broadcast %cst_14 : f32 to vector<2x256xf32>
    %36 = arith.addf %35, %34 : vector<2x256xf32>
    %37 = arith.divf %35, %36 : vector<2x256xf32>
    %38 = vector.extract_strided_slice %37 {offsets = [0, 0], sizes = [2, 64], strides = [1, 1]} : vector<2x256xf32> to vector<2x64xf32>
    %39 = vector.extract_strided_slice %37 {offsets = [0, 64], sizes = [2, 64], strides = [1, 1]} : vector<2x256xf32> to vector<2x64xf32>
    %40 = vector.extract_strided_slice %37 {offsets = [0, 128], sizes = [2, 64], strides = [1, 1]} : vector<2x256xf32> to vector<2x64xf32>
    %cst_15 = arith.constant 2.000000e+00 : f32
    %41 = vector.broadcast %cst_15 : f32 to vector<2x64xf32>
    %42 = arith.mulf %41, %40 : vector<2x64xf32>
    %cst_16 = arith.constant 1.000000e+00 : f32
    %43 = vector.broadcast %cst_16 : f32 to vector<2x64xf32>
    %44 = arith.subf %42, %43 : vector<2x64xf32>
    %45 = vector.extract_strided_slice %37 {offsets = [0, 192], sizes = [2, 64], strides = [1, 1]} : vector<2x256xf32> to vector<2x64xf32>
    %46 = arith.mulf %39, %27 : vector<2x64xf32>
    %47 = arith.mulf %38, %44 : vector<2x64xf32>
    %48 = arith.addf %46, %47 : vector<2x64xf32>
    %49 = math.tanh %48 : vector<2x64xf32>
    %50 = arith.mulf %45, %49 : vector<2x64xf32>
    %51 = vector.extract_strided_slice %5 {offsets = [4, 0], sizes = [2, 256], strides = [1, 1]} : vector<16x256xf32> to vector<2x256xf32>
    %cst_17 = arith.constant dense<0.000000e+00> : vector<2x256xf32>
    %52 = tpu.matmul %50, %6, %cst_17 {dimension_numbers = #tpu.dot_dimension_numbers<[1], [0], [0], [1], [0, 0, 1, 1], [], []>} : vector<2x64xf32>, vector<64x256xf32>, vector<2x256xf32> -> vector<2x256xf32>
    %53 = arith.addf %51, %52 : vector<2x256xf32>
    %54 = arith.negf %53 : vector<2x256xf32>
    %55 = math.exp %54 : vector<2x256xf32>
    %cst_18 = arith.constant 1.000000e+00 : f32
    %56 = vector.broadcast %cst_18 : f32 to vector<2x256xf32>
    %57 = arith.addf %56, %55 : vector<2x256xf32>
    %58 = arith.divf %56, %57 : vector<2x256xf32>
    %59 = vector.extract_strided_slice %58 {offsets = [0, 0], sizes = [2, 64], strides = [1, 1]} : vector<2x256xf32> to vector<2x64xf32>
    %60 = vector.extract_strided_slice %58 {offsets = [0, 64], sizes = [2, 64], strides = [1, 1]} : vector<2x256xf32> to vector<2x64xf32>
    %61 = vector.extract_strided_slice %58 {offsets = [0, 128], sizes = [2, 64], strides = [1, 1]} : vector<2x256xf32> to vector<2x64xf32>
    %cst_19 = arith.constant 2.000000e+00 : f32
    %62 = vector.broadcast %cst_19 : f32 to vector<2x64xf32>
    %63 = arith.mulf %62, %61 : vector<2x64xf32>
    %cst_20 = arith.constant 1.000000e+00 : f32
    %64 = vector.broadcast %cst_20 : f32 to vector<2x64xf32>
    %65 = arith.subf %63, %64 : vector<2x64xf32>
    %66 = vector.extract_strided_slice %58 {offsets = [0, 192], sizes = [2, 64], strides = [1, 1]} : vector<2x256xf32> to vector<2x64xf32>
    %67 = arith.mulf %60, %48 : vector<2x64xf32>
    %68 = arith.mulf %59, %65 : vector<2x64xf32>
    %69 = arith.addf %67, %68 : vector<2x64xf32>
    %70 = math.tanh %69 : vector<2x64xf32>
    %71 = arith.mulf %66, %70 : vector<2x64xf32>
    %72 = vector.extract_strided_slice %5 {offsets = [6, 0], sizes = [2, 256], strides = [1, 1]} : vector<16x256xf32> to vector<2x256xf32>
    %cst_21 = arith.constant dense<0.000000e+00> : vector<2x256xf32>
    %73 = tpu.matmul %71, %6, %cst_21 {dimension_numbers = #tpu.dot_dimension_numbers<[1], [0], [0], [1], [0, 0, 1, 1], [], []>} : vector<2x64xf32>, vector<64x256xf32>, vector<2x256xf32> -> vector<2x256xf32>
    %74 = arith.addf %72, %73 : vector<2x256xf32>
    %75 = arith.negf %74 : vector<2x256xf32>
    %76 = math.exp %75 : vector<2x256xf32>
    %cst_22 = arith.constant 1.000000e+00 : f32
    %77 = vector.broadcast %cst_22 : f32 to vector<2x256xf32>
    %78 = arith.addf %77, %76 : vector<2x256xf32>
    %79 = arith.divf %77, %78 : vector<2x256xf32>
    %80 = vector.extract_strided_slice %79 {offsets = [0, 0], sizes = [2, 64], strides = [1, 1]} : vector<2x256xf32> to vector<2x64xf32>
    %81 = vector.extract_strided_slice %79 {offsets = [0, 64], sizes = [2, 64], strides = [1, 1]} : vector<2x256xf32> to vector<2x64xf32>
    %82 = vector.extract_strided_slice %79 {offsets = [0, 128], sizes = [2, 64], strides = [1, 1]} : vector<2x256xf32> to vector<2x64xf32>
    %cst_23 = arith.constant 2.000000e+00 : f32
    %83 = vector.broadcast %cst_23 : f32 to vector<2x64xf32>
    %84 = arith.mulf %83, %82 : vector<2x64xf32>
    %cst_24 = arith.constant 1.000000e+00 : f32
    %85 = vector.broadcast %cst_24 : f32 to vector<2x64xf32>
    %86 = arith.subf %84, %85 : vector<2x64xf32>
    %87 = vector.extract_strided_slice %79 {offsets = [0, 192], sizes = [2, 64], strides = [1, 1]} : vector<2x256xf32> to vector<2x64xf32>
    %88 = arith.mulf %81, %69 : vector<2x64xf32>
    %89 = arith.mulf %80, %86 : vector<2x64xf32>
    %90 = arith.addf %88, %89 : vector<2x64xf32>
    %91 = math.tanh %90 : vector<2x64xf32>
    %92 = arith.mulf %87, %91 : vector<2x64xf32>
    %93 = vector.extract_strided_slice %5 {offsets = [8, 0], sizes = [2, 256], strides = [1, 1]} : vector<16x256xf32> to vector<2x256xf32>
    %cst_25 = arith.constant dense<0.000000e+00> : vector<2x256xf32>
    %94 = tpu.matmul %92, %6, %cst_25 {dimension_numbers = #tpu.dot_dimension_numbers<[1], [0], [0], [1], [0, 0, 1, 1], [], []>} : vector<2x64xf32>, vector<64x256xf32>, vector<2x256xf32> -> vector<2x256xf32>
    %95 = arith.addf %93, %94 : vector<2x256xf32>
    %96 = arith.negf %95 : vector<2x256xf32>
    %97 = math.exp %96 : vector<2x256xf32>
    %cst_26 = arith.constant 1.000000e+00 : f32
    %98 = vector.broadcast %cst_26 : f32 to vector<2x256xf32>
    %99 = arith.addf %98, %97 : vector<2x256xf32>
    %100 = arith.divf %98, %99 : vector<2x256xf32>
    %101 = vector.extract_strided_slice %100 {offsets = [0, 0], sizes = [2, 64], strides = [1, 1]} : vector<2x256xf32> to vector<2x64xf32>
    %102 = vector.extract_strided_slice %100 {offsets = [0, 64], sizes = [2, 64], strides = [1, 1]} : vector<2x256xf32> to vector<2x64xf32>
    %103 = vector.extract_strided_slice %100 {offsets = [0, 128], sizes = [2, 64], strides = [1, 1]} : vector<2x256xf32> to vector<2x64xf32>
    %cst_27 = arith.constant 2.000000e+00 : f32
    %104 = vector.broadcast %cst_27 : f32 to vector<2x64xf32>
    %105 = arith.mulf %104, %103 : vector<2x64xf32>
    %cst_28 = arith.constant 1.000000e+00 : f32
    %106 = vector.broadcast %cst_28 : f32 to vector<2x64xf32>
    %107 = arith.subf %105, %106 : vector<2x64xf32>
    %108 = vector.extract_strided_slice %100 {offsets = [0, 192], sizes = [2, 64], strides = [1, 1]} : vector<2x256xf32> to vector<2x64xf32>
    %109 = arith.mulf %102, %90 : vector<2x64xf32>
    %110 = arith.mulf %101, %107 : vector<2x64xf32>
    %111 = arith.addf %109, %110 : vector<2x64xf32>
    %112 = math.tanh %111 : vector<2x64xf32>
    %113 = arith.mulf %108, %112 : vector<2x64xf32>
    %114 = vector.extract_strided_slice %5 {offsets = [10, 0], sizes = [2, 256], strides = [1, 1]} : vector<16x256xf32> to vector<2x256xf32>
    %cst_29 = arith.constant dense<0.000000e+00> : vector<2x256xf32>
    %115 = tpu.matmul %113, %6, %cst_29 {dimension_numbers = #tpu.dot_dimension_numbers<[1], [0], [0], [1], [0, 0, 1, 1], [], []>} : vector<2x64xf32>, vector<64x256xf32>, vector<2x256xf32> -> vector<2x256xf32>
    %116 = arith.addf %114, %115 : vector<2x256xf32>
    %117 = arith.negf %116 : vector<2x256xf32>
    %118 = math.exp %117 : vector<2x256xf32>
    %cst_30 = arith.constant 1.000000e+00 : f32
    %119 = vector.broadcast %cst_30 : f32 to vector<2x256xf32>
    %120 = arith.addf %119, %118 : vector<2x256xf32>
    %121 = arith.divf %119, %120 : vector<2x256xf32>
    %122 = vector.extract_strided_slice %121 {offsets = [0, 0], sizes = [2, 64], strides = [1, 1]} : vector<2x256xf32> to vector<2x64xf32>
    %123 = vector.extract_strided_slice %121 {offsets = [0, 64], sizes = [2, 64], strides = [1, 1]} : vector<2x256xf32> to vector<2x64xf32>
    %124 = vector.extract_strided_slice %121 {offsets = [0, 128], sizes = [2, 64], strides = [1, 1]} : vector<2x256xf32> to vector<2x64xf32>
    %cst_31 = arith.constant 2.000000e+00 : f32
    %125 = vector.broadcast %cst_31 : f32 to vector<2x64xf32>
    %126 = arith.mulf %125, %124 : vector<2x64xf32>
    %cst_32 = arith.constant 1.000000e+00 : f32
    %127 = vector.broadcast %cst_32 : f32 to vector<2x64xf32>
    %128 = arith.subf %126, %127 : vector<2x64xf32>
    %129 = vector.extract_strided_slice %121 {offsets = [0, 192], sizes = [2, 64], strides = [1, 1]} : vector<2x256xf32> to vector<2x64xf32>
    %130 = arith.mulf %123, %111 : vector<2x64xf32>
    %131 = arith.mulf %122, %128 : vector<2x64xf32>
    %132 = arith.addf %130, %131 : vector<2x64xf32>
    %133 = math.tanh %132 : vector<2x64xf32>
    %134 = arith.mulf %129, %133 : vector<2x64xf32>
    %135 = vector.extract_strided_slice %5 {offsets = [12, 0], sizes = [2, 256], strides = [1, 1]} : vector<16x256xf32> to vector<2x256xf32>
    %cst_33 = arith.constant dense<0.000000e+00> : vector<2x256xf32>
    %136 = tpu.matmul %134, %6, %cst_33 {dimension_numbers = #tpu.dot_dimension_numbers<[1], [0], [0], [1], [0, 0, 1, 1], [], []>} : vector<2x64xf32>, vector<64x256xf32>, vector<2x256xf32> -> vector<2x256xf32>
    %137 = arith.addf %135, %136 : vector<2x256xf32>
    %138 = arith.negf %137 : vector<2x256xf32>
    %139 = math.exp %138 : vector<2x256xf32>
    %cst_34 = arith.constant 1.000000e+00 : f32
    %140 = vector.broadcast %cst_34 : f32 to vector<2x256xf32>
    %141 = arith.addf %140, %139 : vector<2x256xf32>
    %142 = arith.divf %140, %141 : vector<2x256xf32>
    %143 = vector.extract_strided_slice %142 {offsets = [0, 0], sizes = [2, 64], strides = [1, 1]} : vector<2x256xf32> to vector<2x64xf32>
    %144 = vector.extract_strided_slice %142 {offsets = [0, 64], sizes = [2, 64], strides = [1, 1]} : vector<2x256xf32> to vector<2x64xf32>
    %145 = vector.extract_strided_slice %142 {offsets = [0, 128], sizes = [2, 64], strides = [1, 1]} : vector<2x256xf32> to vector<2x64xf32>
    %cst_35 = arith.constant 2.000000e+00 : f32
    %146 = vector.broadcast %cst_35 : f32 to vector<2x64xf32>
    %147 = arith.mulf %146, %145 : vector<2x64xf32>
    %cst_36 = arith.constant 1.000000e+00 : f32
    %148 = vector.broadcast %cst_36 : f32 to vector<2x64xf32>
    %149 = arith.subf %147, %148 : vector<2x64xf32>
    %150 = vector.extract_strided_slice %142 {offsets = [0, 192], sizes = [2, 64], strides = [1, 1]} : vector<2x256xf32> to vector<2x64xf32>
    %151 = arith.mulf %144, %132 : vector<2x64xf32>
    %152 = arith.mulf %143, %149 : vector<2x64xf32>
    %153 = arith.addf %151, %152 : vector<2x64xf32>
    %154 = math.tanh %153 : vector<2x64xf32>
    %155 = arith.mulf %150, %154 : vector<2x64xf32>
    %156 = vector.extract_strided_slice %5 {offsets = [14, 0], sizes = [2, 256], strides = [1, 1]} : vector<16x256xf32> to vector<2x256xf32>
    %cst_37 = arith.constant dense<0.000000e+00> : vector<2x256xf32>
    %157 = tpu.matmul %155, %6, %cst_37 {dimension_numbers = #tpu.dot_dimension_numbers<[1], [0], [0], [1], [0, 0, 1, 1], [], []>} : vector<2x64xf32>, vector<64x256xf32>, vector<2x256xf32> -> vector<2x256xf32>
    %158 = arith.addf %156, %157 : vector<2x256xf32>
    %159 = arith.negf %158 : vector<2x256xf32>
    %160 = math.exp %159 : vector<2x256xf32>
    %cst_38 = arith.constant 1.000000e+00 : f32
    %161 = vector.broadcast %cst_38 : f32 to vector<2x256xf32>
    %162 = arith.addf %161, %160 : vector<2x256xf32>
    %163 = arith.divf %161, %162 : vector<2x256xf32>
    %164 = vector.extract_strided_slice %163 {offsets = [0, 0], sizes = [2, 64], strides = [1, 1]} : vector<2x256xf32> to vector<2x64xf32>
    %165 = vector.extract_strided_slice %163 {offsets = [0, 64], sizes = [2, 64], strides = [1, 1]} : vector<2x256xf32> to vector<2x64xf32>
    %166 = vector.extract_strided_slice %163 {offsets = [0, 128], sizes = [2, 64], strides = [1, 1]} : vector<2x256xf32> to vector<2x64xf32>
    %cst_39 = arith.constant 2.000000e+00 : f32
    %167 = vector.broadcast %cst_39 : f32 to vector<2x64xf32>
    %168 = arith.mulf %167, %166 : vector<2x64xf32>
    %cst_40 = arith.constant 1.000000e+00 : f32
    %169 = vector.broadcast %cst_40 : f32 to vector<2x64xf32>
    %170 = arith.subf %168, %169 : vector<2x64xf32>
    %171 = vector.extract_strided_slice %163 {offsets = [0, 192], sizes = [2, 64], strides = [1, 1]} : vector<2x256xf32> to vector<2x64xf32>
    %172 = arith.mulf %165, %153 : vector<2x64xf32>
    %173 = arith.mulf %164, %170 : vector<2x64xf32>
    %174 = arith.addf %172, %173 : vector<2x64xf32>
    %175 = math.tanh %174 : vector<2x64xf32>
    %176 = arith.mulf %171, %175 : vector<2x64xf32>
    %177 = vector.extract_strided_slice %29 {offsets = [0, 0], sizes = [2, 32], strides = [1, 1]} : vector<2x64xf32> to vector<2x32xf32>
    %178 = vector.extract_strided_slice %50 {offsets = [0, 0], sizes = [2, 32], strides = [1, 1]} : vector<2x64xf32> to vector<2x32xf32>
    %179 = vector.extract_strided_slice %71 {offsets = [0, 0], sizes = [2, 32], strides = [1, 1]} : vector<2x64xf32> to vector<2x32xf32>
    %180 = vector.extract_strided_slice %92 {offsets = [0, 0], sizes = [2, 32], strides = [1, 1]} : vector<2x64xf32> to vector<2x32xf32>
    %181 = vector.extract_strided_slice %113 {offsets = [0, 0], sizes = [2, 32], strides = [1, 1]} : vector<2x64xf32> to vector<2x32xf32>
    %182 = vector.extract_strided_slice %134 {offsets = [0, 0], sizes = [2, 32], strides = [1, 1]} : vector<2x64xf32> to vector<2x32xf32>
    %183 = vector.extract_strided_slice %155 {offsets = [0, 0], sizes = [2, 32], strides = [1, 1]} : vector<2x64xf32> to vector<2x32xf32>
    %184 = vector.extract_strided_slice %176 {offsets = [0, 0], sizes = [2, 32], strides = [1, 1]} : vector<2x64xf32> to vector<2x32xf32>
    %185 = tpu.concatenate %177, %178, %179, %180, %181, %182, %183, %184 in 0 : vector<2x32xf32>, vector<2x32xf32>, vector<2x32xf32>, vector<2x32xf32>, vector<2x32xf32>, vector<2x32xf32>, vector<2x32xf32>, vector<2x32xf32> -> vector<16x32xf32>
    %186 = vector.extract_strided_slice %176 {offsets = [0, 32], sizes = [2, 32], strides = [1, 1]} : vector<2x64xf32> to vector<2x32xf32>
    %187 = vector.extract_strided_slice %155 {offsets = [0, 32], sizes = [2, 32], strides = [1, 1]} : vector<2x64xf32> to vector<2x32xf32>
    %188 = vector.extract_strided_slice %134 {offsets = [0, 32], sizes = [2, 32], strides = [1, 1]} : vector<2x64xf32> to vector<2x32xf32>
    %189 = vector.extract_strided_slice %113 {offsets = [0, 32], sizes = [2, 32], strides = [1, 1]} : vector<2x64xf32> to vector<2x32xf32>
    %190 = vector.extract_strided_slice %92 {offsets = [0, 32], sizes = [2, 32], strides = [1, 1]} : vector<2x64xf32> to vector<2x32xf32>
    %191 = vector.extract_strided_slice %71 {offsets = [0, 32], sizes = [2, 32], strides = [1, 1]} : vector<2x64xf32> to vector<2x32xf32>
    %192 = vector.extract_strided_slice %50 {offsets = [0, 32], sizes = [2, 32], strides = [1, 1]} : vector<2x64xf32> to vector<2x32xf32>
    %193 = vector.extract_strided_slice %29 {offsets = [0, 32], sizes = [2, 32], strides = [1, 1]} : vector<2x64xf32> to vector<2x32xf32>
    %194 = tpu.concatenate %186, %187, %188, %189, %190, %191, %192, %193 in 0 : vector<2x32xf32>, vector<2x32xf32>, vector<2x32xf32>, vector<2x32xf32>, vector<2x32xf32>, vector<2x32xf32>, vector<2x32xf32>, vector<2x32xf32> -> vector<16x32xf32>
    %c0_41 = arith.constant 0 : index
    %c0_42 = arith.constant 0 : index
    %195 = vector.load %arg4[%c0_41, %c0_42] : memref<32x16xf32, #tpu.memory_space<vmem>>, vector<32x16xf32>
    %cst_43 = arith.constant dense<0.000000e+00> : vector<16x16xf32>
    %196 = tpu.matmul %185, %195, %cst_43 {dimension_numbers = #tpu.dot_dimension_numbers<[1], [0], [0], [1], [0, 0, 1, 1], [], []>} : vector<16x32xf32>, vector<32x16xf32>, vector<16x16xf32> -> vector<16x16xf32>
    %c0_44 = arith.constant 0 : index
    %c0_45 = arith.constant 0 : index
    %197 = vector.load %arg5[%c0_44, %c0_45] : memref<32x16xf32, #tpu.memory_space<vmem>>, vector<32x16xf32>
    %cst_46 = arith.constant dense<0.000000e+00> : vector<16x16xf32>
    %198 = tpu.matmul %194, %197, %cst_46 {dimension_numbers = #tpu.dot_dimension_numbers<[1], [0], [0], [1], [0, 0, 1, 1], [], []>} : vector<16x32xf32>, vector<32x16xf32>, vector<16x16xf32> -> vector<16x16xf32>
    %199 = arith.addf %196, %198 : vector<16x16xf32>
    %c0_47 = arith.constant 0 : index
    %c0_48 = arith.constant 0 : index
    %200 = vector.load %arg6[%c0_47, %c0_48] : memref<1x16xf32, #tpu.memory_space<vmem>>, vector<1x16xf32>
    %201 = vector.broadcast %200 : vector<1x16xf32> to vector<16x16xf32>
    %202 = arith.addf %199, %201 : vector<16x16xf32>
    %c0_49 = arith.constant 0 : index
    %c0_50 = arith.constant 0 : index
    %203 = vector.load %arg7[%c0_49, %c0_50] : memref<16x16xf32, #tpu.memory_space<vmem>>, vector<16x16xf32>
    tpu.vector_store %arg7[%c0_49, %c0_50], %202 {strides = array<i32>} : memref<16x16xf32, #tpu.memory_space<vmem>>, vector<16x16xf32>,
    return
  }
}

</mosaic_0001>

<llo_original>
// kernel: rnn_forward.1
$region0: #{rnn_forward.1}
  #allocation0 [shape = 'u32[]', space=smem, size = 0x4, offset = 0x4, fixed_abs, tag = 'smem constant byte address 0x4 - core index']
  #allocation1 [shape = 'u32[72,128]{1,0:T(1,128)}', space=vmem, size = 0x9000, scoped, tag = 'internal scratch']
  %s0 = inlined_call_operand.vmem [shape: f32[16,64], index: 0, kind: input, shape index: {}]
  %s1 = inlined_call_operand.vmem [shape: f32[64,256], index: 1, kind: input, shape index: {}]
  %s2 = inlined_call_operand.vmem [shape: f32[64,256], index: 2, kind: input, shape index: {}]
  %s3 = inlined_call_operand.vmem [shape: f32[1,256], index: 3, kind: input, shape index: {}]
  %s4 = inlined_call_operand.vmem [shape: f32[32,16], index: 4, kind: input, shape index: {}]
  %s5 = inlined_call_operand.vmem [shape: f32[32,16], index: 5, kind: input, shape index: {}]
  %s6 = inlined_call_operand.vmem [shape: f32[1,16], index: 6, kind: input, shape index: {}]
  %s7 = inlined_call_operand.vmem [shape: f32[16,16], index: 7, kind: output, shape index: {}]
  %s8 = sld [smem:[#allocation0]]
  $region38: #{rnn_forward.1} parent=0
    _
  %s10 = ssub.s32 1, %s8
  %s11 = scalar_select 0, %s10, %s8
  // Predicated region
  $region2: #{rnn_forward.1} parent=0 // pred_check
    _
  $region3: #{rnn_forward.1} parent=0 // pred_check_branch
    %13 = sbr.rel (0) target = $region5
  $region4: #{rnn_forward.1} parent=0 // pred_region
    _
  $region5: #{rnn_forward.1} parent=0 // pred_fallthru
    _
  // Predicated region
  $region6: #{rnn_forward.1} parent=0 // pred_check
    _
  $region7: #{rnn_forward.1} parent=0 // pred_check_branch
    %15 = sbr.rel (0) target = $region9
  $region8: #{rnn_forward.1} parent=0 // pred_region
    _
  $region9: #{rnn_forward.1} parent=0 // pred_fallthru
    _
  // Predicated region
  $region10: #{rnn_forward.1} parent=0 // pred_check
    _
  $region11: #{rnn_forward.1} parent=0 // pred_check_branch
    %17 = sbr.rel (0) target = $region13
  $region12: #{rnn_forward.1} parent=0 // pred_region
    _
  $region13: #{rnn_forward.1} parent=0 // pred_fallthru
    _
  // Predicated region
  $region14: #{rnn_forward.1} parent=0 // pred_check
    _
  $region15: #{rnn_forward.1} parent=0 // pred_check_branch
    %19 = sbr.rel (0) target = $region17
  $region16: #{rnn_forward.1} parent=0 // pred_region
    _
  $region17: #{rnn_forward.1} parent=0 // pred_fallthru
    _
  // Predicated region
  $region18: #{rnn_forward.1} parent=0 // pred_check
    _
  $region19: #{rnn_forward.1} parent=0 // pred_check_branch
    %21 = sbr.rel (0) target = $region21
  $region20: #{rnn_forward.1} parent=0 // pred_region
    _
  $region21: #{rnn_forward.1} parent=0 // pred_fallthru
    _
  // Predicated region
  $region22: #{rnn_forward.1} parent=0 // pred_check
    _
  $region23: #{rnn_forward.1} parent=0 // pred_check_branch
    %23 = sbr.rel (0) target = $region25
  $region24: #{rnn_forward.1} parent=0 // pred_region
    _
  $region25: #{rnn_forward.1} parent=0 // pred_fallthru
    _
  // Predicated region
  $region26: #{rnn_forward.1} parent=0 // pred_check
    _
  $region27: #{rnn_forward.1} parent=0 // pred_check_branch
    %25 = sbr.rel (0) target = $region29
  $region28: #{rnn_forward.1} parent=0 // pred_region
    _
  $region29: #{rnn_forward.1} parent=0 // pred_fallthru
    _
  %v26 = vld [vmem:[%s0] sm:$0xff]
  %v27 = vld [vmem:[%s0 + $0x8] sm:$0xff]
  %v28 = vld [vmem:[%s1] sm:$0xff]
  %v29 = vld [vmem:[%s1 + $0x8] sm:$0xff]
  %v30 = vld [vmem:[%s1 + $0x10] sm:$0xff]
  %v31 = vld [vmem:[%s1 + $0x18] sm:$0xff]
  %v32 = vld [vmem:[%s1 + $0x20] sm:$0xff]
  %v33 = vld [vmem:[%s1 + $0x28] sm:$0xff]
  %v34 = vld [vmem:[%s1 + $0x30] sm:$0xff]
  %v35 = vld [vmem:[%s1 + $0x38] sm:$0xff]
  %v36 = vld [vmem:[%s1 + $0x40] sm:$0xff]
  %v37 = vld [vmem:[%s1 + $0x48] sm:$0xff]
  %v38 = vld [vmem:[%s1 + $0x50] sm:$0xff]
  %v39 = vld [vmem:[%s1 + $0x58] sm:$0xff]
  %v40 = vld [vmem:[%s1 + $0x60] sm:$0xff]
  %v41 = vld [vmem:[%s1 + $0x68] sm:$0xff]
  %v42 = vld [vmem:[%s1 + $0x70] sm:$0xff]
  %v43 = vld [vmem:[%s1 + $0x78] sm:$0xff]
  %v44 = vld [vmem:[%s3] sm:$0x3]
  %v46 = vperm.slane %v44, 0
  %v47 = vperm.slane %v44, 1
  %vm50 = vcmask 523264
  %v52 = vsel %vm50, %v26, 0
  %v55 = vsel %vm50, %v27, 0
  %57 = vmatpush.msra.mxu0 0.0
  %58 = vmatpush.msra.mxu0 0.0
  %59 = vmatpush.msra.mxu0 0.0
  %60 = vmatpush.msra.mxu0 0.0
  %61 = vmatpush.msra.mxu0 0.0
  %62 = vmatpush.msra.mxu0 0.0
  %63 = vmatpush.msra.mxu0 0.0
  %64 = vmatpush.msra.mxu0 0.0
  %65 = vmatpush.msra.mxu0 %v42
  %66 = vmatpush.msra.mxu0 %v40
  %67 = vmatpush.msra.mxu0 %v38
  %68 = vmatpush.msra.mxu0 %v36
  %69 = vmatpush.msra.mxu0 %v34
  %70 = vmatpush.msra.mxu0 %v32
  %71 = vmatpush.msra.mxu0 %v30
  %72 = vmatpush.msra.mxu0 %v28
  %73 = vmatmul.f32.gmra.mxu0 %v52
  %v74 = vpop.f32.mrf.mxu0
  %v75 = vadd.f32 %v46, %v74
  %76 = vmatmul.f32.gmra.mxu0 %v55
  %v77 = vpop.f32.mrf.mxu0
  %v78 = vadd.f32 %v46, %v77
  %79 = vdwg.mxu0
  %80 = vmatpush.msra.mxu0 0.0
  %81 = vmatpush.msra.mxu0 0.0
  %82 = vmatpush.msra.mxu0 0.0
  %83 = vmatpush.msra.mxu0 0.0
  %84 = vmatpush.msra.mxu0 0.0
  %85 = vmatpush.msra.mxu0 0.0
  %86 = vmatpush.msra.mxu0 0.0
  %87 = vmatpush.msra.mxu0 0.0
  %88 = vmatpush.msra.mxu0 %v43
  %89 = vmatpush.msra.mxu0 %v41
  %90 = vmatpush.msra.mxu0 %v39
  %91 = vmatpush.msra.mxu0 %v37
  %92 = vmatpush.msra.mxu0 %v35
  %93 = vmatpush.msra.mxu0 %v33
  %94 = vmatpush.msra.mxu0 %v31
  %95 = vmatpush.msra.mxu0 %v29
  %96 = vmatmul.f32.gmra.mxu0 %v52
  %v97 = vpop.f32.mrf.mxu0
  %v98 = vadd.f32 %v47, %v97
  %99 = vmatmul.f32.gmra.mxu0 %v55
  %v100 = vpop.f32.mrf.mxu0
  %v101 = vadd.f32 %v47, %v100
  %102 = vdwg.mxu0
  %v103 = vld [vmem:[%s2] sm:$0xff]
  %v104 = vld [vmem:[%s2 + $0x8] sm:$0xff]
  %v105 = vld [vmem:[%s2 + $0x10] sm:$0xff]
  %v106 = vld [vmem:[%s2 + $0x18] sm:$0xff]
  %v107 = vld [vmem:[%s2 + $0x20] sm:$0xff]
  %v108 = vld [vmem:[%s2 + $0x28] sm:$0xff]
  %v109 = vld [vmem:[%s2 + $0x30] sm:$0xff]
  %v110 = vld [vmem:[%s2 + $0x38] sm:$0xff]
  %v111 = vld [vmem:[%s2 + $0x40] sm:$0xff]
  %v112 = vld [vmem:[%s2 + $0x48] sm:$0xff]
  %v113 = vld [vmem:[%s2 + $0x50] sm:$0xff]
  %v114 = vld [vmem:[%s2 + $0x58] sm:$0xff]
  %v115 = vld [vmem:[%s2 + $0x60] sm:$0xff]
  %v116 = vld [vmem:[%s2 + $0x68] sm:$0xff]
  %v117 = vld [vmem:[%s2 + $0x70] sm:$0xff]
  %v118 = vld [vmem:[%s2 + $0x78] sm:$0xff]
  %v120 = vsel %vm50, 0.0, 0
  %122 = vmatpush.msra.mxu0 0.0
  %123 = vmatpush.msra.mxu0 0.0
  %124 = vmatpush.msra.mxu0 0.0
  %125 = vmatpush.msra.mxu0 0.0
  %126 = vmatpush.msra.mxu0 0.0
  %127 = vmatpush.msra.mxu0 0.0
  %128 = vmatpush.msra.mxu0 0.0
  %129 = vmatpush.msra.mxu0 0.0
  %130 = vmatpush.msra.mxu0 %v117
  %131 = vmatpush.msra.mxu0 %v115
  %132 = vmatpush.msra.mxu0 %v113
  %133 = vmatpush.msra.mxu0 %v111
  %134 = vmatpush.msra.mxu0 %v109
  %135 = vmatpush.msra.mxu0 %v107
  %136 = vmatpush.msra.mxu0 %v105
  %137 = vmatpush.msra.mxu0 %v103
  %138 = vmatmul.f32.gmra.mxu0 %v120
  %v139 = vpop.f32.mrf.mxu0
  %v140 = vadd.f32 0.0, %v139
  %141 = vdwg.mxu0
  %142 = vmatpush.msra.mxu0 0.0
  %143 = vmatpush.msra.mxu0 0.0
  %144 = vmatpush.msra.mxu0 0.0
  %145 = vmatpush.msra.mxu0 0.0
  %146 = vmatpush.msra.mxu0 0.0
  %147 = vmatpush.msra.mxu0 0.0
  %148 = vmatpush.msra.mxu0 0.0
  %149 = vmatpush.msra.mxu0 0.0
  %150 = vmatpush.msra.mxu0 %v118
  %151 = vmatpush.msra.mxu0 %v116
  %152 = vmatpush.msra.mxu0 %v114
  %153 = vmatpush.msra.mxu0 %v112
  %154 = vmatpush.msra.mxu0 %v110
  %155 = vmatpush.msra.mxu0 %v108
  %156 = vmatpush.msra.mxu0 %v106
  %157 = vmatpush.msra.mxu0 %v104
  %158 = vmatmul.f32.gmra.mxu0 %v120
  %v159 = vpop.f32.mrf.mxu0
  %v160 = vadd.f32 0.0, %v159
  %161 = vdwg.mxu0
  %v162 = vadd.f32 %v75, %v140
  %v163 = vadd.f32 %v98, %v160
  %v164 = vxor.u32 %v162, 2147483648
  %v165 = vxor.u32 %v163, 2147483648
  %v166 = vmul.f32 %v164, 1.442695
  %v167 = vpow.pop %v166
  %v168 = vmul.f32 %v165, 1.442695
  %v169 = vpow.pop %v168
  %v170 = vadd.f32 %v167, 1.0
  %v171 = vadd.f32 %v169, 1.0
  %v172 = vrcp.pop %v170
  %v173 = vmul.f32 %v170, %v172
  %v174 = vsub.f32 1.0, %v173
  %v175 = vmul.f32 %v172, %v174
  %v176 = vadd.f32 %v172, %v175
  %vm177 = vweird.f32 %v170
  %vm178 = vweird.f32 %v172
  %vm179 = vmor %vm177, %vm178
  %v180 = vsel %vm179, %v172, %v176
  %v181 = vand.u32 2147483647, %v170
  %vm182 = vcmp.eq.f32.partialorder %v181, 8.507059e+37
  %v183 = vand.u32 %v170, 2147483648
  %v184 = vor.u32 1.1754944e-38, %v183
  %v185 = vsel %vm182, %v184, %v180
  %v186 = vmul.f32 1.0, %v185
  %v187 = vrcp.pop %v171
  %v188 = vmul.f32 %v171, %v187
  %v189 = vsub.f32 1.0, %v188
  %v190 = vmul.f32 %v187, %v189
  %v191 = vadd.f32 %v187, %v190
  %vm192 = vweird.f32 %v171
  %vm193 = vweird.f32 %v187
  %vm194 = vmor %vm192, %vm193
  %v195 = vsel %vm194, %v187, %v191
  %v196 = vand.u32 2147483647, %v171
  %vm197 = vcmp.eq.f32.partialorder %v196, 8.507059e+37
  %v198 = vand.u32 %v171, 2147483648
  %v199 = vor.u32 1.1754944e-38, %v198
  %v200 = vsel %vm197, %v199, %v195
  %v201 = vmul.f32 1.0, %v200
  %v202 = vmul.f32 %v201, 2.0
  %v203 = vsub.f32 %v202, 1.0
  %v204 = vmul.f32 %v186, 0.0
  %v205 = vmul.f32 %v186, %v203
  %207 = vrot.lane.b32.xlu0 %v205, 64
  %v208 = vpop.permute.xlu0 %207
  %v210 = vadd.f32 %v204, %v208
  %v211 = vtanh.pop %v210
  %v212 = vmul.f32 %v201, %v211
  %214 = vrot.lane.b32.xlu0 %v212, 64
  %v215 = vpop.permute.xlu0 %214
  %v216 = vsel %vm50, %v215, 0
  %218 = vmatpush.msra.mxu0 0.0
  %219 = vmatpush.msra.mxu0 0.0
  %220 = vmatpush.msra.mxu0 0.0
  %221 = vmatpush.msra.mxu0 0.0
  %222 = vmatpush.msra.mxu0 0.0
  %223 = vmatpush.msra.mxu0 0.0
  %224 = vmatpush.msra.mxu0 0.0
  %225 = vmatpush.msra.mxu0 0.0
  %226 = vmatpush.msra.mxu0 %v117
  %227 = vmatpush.msra.mxu0 %v115
  %228 = vmatpush.msra.mxu0 %v113
  %229 = vmatpush.msra.mxu0 %v111
  %230 = vmatpush.msra.mxu0 %v109
  %231 = vmatpush.msra.mxu0 %v107
  %232 = vmatpush.msra.mxu0 %v105
  %233 = vmatpush.msra.mxu0 %v103
  %234 = vmatmul.f32.gmra.mxu0 %v216
  %v235 = vpop.f32.mrf.mxu0
  %v236 = vadd.f32 0.0, %v235
  %237 = vdwg.mxu0
  %238 = vmatpush.msra.mxu0 0.0
  %239 = vmatpush.msra.mxu0 0.0
  %240 = vmatpush.msra.mxu0 0.0
  %241 = vmatpush.msra.mxu0 0.0
  %242 = vmatpush.msra.mxu0 0.0
  %243 = vmatpush.msra.mxu0 0.0
  %244 = vmatpush.msra.mxu0 0.0
  %245 = vmatpush.msra.mxu0 0.0
  %246 = vmatpush.msra.mxu0 %v118
  %247 = vmatpush.msra.mxu0 %v116
  %248 = vmatpush.msra.mxu0 %v114
  %249 = vmatpush.msra.mxu0 %v112
  %250 = vmatpush.msra.mxu0 %v110
  %251 = vmatpush.msra.mxu0 %v108
  %252 = vmatpush.msra.mxu0 %v106
  %253 = vmatpush.msra.mxu0 %v104
  %254 = vmatmul.f32.gmra.mxu0 %v216
  %v255 = vpop.f32.mrf.mxu0
  %v256 = vadd.f32 0.0, %v255
  %257 = vdwg.mxu0
  %v260 = vrot.slane %v236, 6
  %v261 = vrot.slane %v256, 6
  %v264 = vadd.f32 %v75, %v260
  %v265 = vadd.f32 %v98, %v261
  %v266 = vxor.u32 %v264, 2147483648
  %v267 = vxor.u32 %v265, 2147483648
  %v268 = vmul.f32 %v266, 1.442695
  %v269 = vpow.pop %v268
  %v270 = vmul.f32 %v267, 1.442695
  %v271 = vpow.pop %v270
  %v272 = vadd.f32 %v269, 1.0
  %v273 = vadd.f32 %v271, 1.0
  %v274 = vrcp.pop %v272
  %v275 = vmul.f32 %v272, %v274
  %v276 = vsub.f32 1.0, %v275
  %v277 = vmul.f32 %v274, %v276
  %v278 = vadd.f32 %v274, %v277
  %vm279 = vweird.f32 %v272
  %vm280 = vweird.f32 %v274
  %vm281 = vmor %vm279, %vm280
  %v282 = vsel %vm281, %v274, %v278
  %v283 = vand.u32 2147483647, %v272
  %vm284 = vcmp.eq.f32.partialorder %v283, 8.507059e+37
  %v285 = vand.u32 %v272, 2147483648
  %v286 = vor.u32 1.1754944e-38, %v285
  %v287 = vsel %vm284, %v286, %v282
  %v288 = vmul.f32 1.0, %v287
  %v289 = vrcp.pop %v273
  %v290 = vmul.f32 %v273, %v289
  %v291 = vsub.f32 1.0, %v290
  %v292 = vmul.f32 %v289, %v291
  %v293 = vadd.f32 %v289, %v292
  %vm294 = vweird.f32 %v273
  %vm295 = vweird.f32 %v289
  %vm296 = vmor %vm294, %vm295
  %v297 = vsel %vm296, %v289, %v293
  %v298 = vand.u32 2147483647, %v273
  %vm299 = vcmp.eq.f32.partialorder %v298, 8.507059e+37
  %v300 = vand.u32 %v273, 2147483648
  %v301 = vor.u32 1.1754944e-38, %v300
  %v302 = vsel %vm299, %v301, %v297
  %v303 = vmul.f32 1.0, %v302
  %v304 = vmul.f32 %v303, 2.0
  %v305 = vsub.f32 %v304, 1.0
  %v307 = vrot.slane %v210, 6
  %v309 = vmul.f32 %v288, %v307
  %v310 = vmul.f32 %v288, %v305
  %312 = vrot.lane.b32.xlu0 %v310, 64
  %v313 = vpop.permute.xlu0 %312
  %v315 = vadd.f32 %v309, %v313
  %v316 = vtanh.pop %v315
  %v317 = vmul.f32 %v303, %v316
  %v319 = vrot.slane %v317, 2
  %320 = vrot.lane.b32.xlu0 %v319, 64
  %v321 = vpop.permute.xlu0 %320
  %v322 = vsel %vm50, %v321, 0
  %324 = vmatpush.msra.mxu0 0.0
  %325 = vmatpush.msra.mxu0 0.0
  %326 = vmatpush.msra.mxu0 0.0
  %327 = vmatpush.msra.mxu0 0.0
  %328 = vmatpush.msra.mxu0 0.0
  %329 = vmatpush.msra.mxu0 0.0
  %330 = vmatpush.msra.mxu0 0.0
  %331 = vmatpush.msra.mxu0 0.0
  %332 = vmatpush.msra.mxu0 %v117
  %333 = vmatpush.msra.mxu0 %v115
  %334 = vmatpush.msra.mxu0 %v113
  %335 = vmatpush.msra.mxu0 %v111
  %336 = vmatpush.msra.mxu0 %v109
  %337 = vmatpush.msra.mxu0 %v107
  %338 = vmatpush.msra.mxu0 %v105
  %339 = vmatpush.msra.mxu0 %v103
  %340 = vmatmul.f32.gmra.mxu0 %v322
  %v341 = vpop.f32.mrf.mxu0
  %v342 = vadd.f32 0.0, %v341
  %343 = vdwg.mxu0
  %344 = vmatpush.msra.mxu0 0.0
  %345 = vmatpush.msra.mxu0 0.0
  %346 = vmatpush.msra.mxu0 0.0
  %347 = vmatpush.msra.mxu0 0.0
  %348 = vmatpush.msra.mxu0 0.0
  %349 = vmatpush.msra.mxu0 0.0
  %350 = vmatpush.msra.mxu0 0.0
  %351 = vmatpush.msra.mxu0 0.0
  %352 = vmatpush.msra.mxu0 %v118
  %353 = vmatpush.msra.mxu0 %v116
  %354 = vmatpush.msra.mxu0 %v114
  %355 = vmatpush.msra.mxu0 %v112
  %356 = vmatpush.msra.mxu0 %v110
  %357 = vmatpush.msra.mxu0 %v108
  %358 = vmatpush.msra.mxu0 %v106
  %359 = vmatpush.msra.mxu0 %v104
  %360 = vmatmul.f32.gmra.mxu0 %v322
  %v361 = vpop.f32.mrf.mxu0
  %v362 = vadd.f32 0.0, %v361
  %363 = vdwg.mxu0
  %v366 = vrot.slane %v342, 4
  %v367 = vrot.slane %v362, 4
  %v370 = vadd.f32 %v75, %v366
  %v371 = vadd.f32 %v98, %v367
  %v372 = vxor.u32 %v370, 2147483648
  %v373 = vxor.u32 %v371, 2147483648
  %v374 = vmul.f32 %v372, 1.442695
  %v375 = vpow.pop %v374
  %v376 = vmul.f32 %v373, 1.442695
  %v377 = vpow.pop %v376
  %v378 = vadd.f32 %v375, 1.0
  %v379 = vadd.f32 %v377, 1.0
  %v380 = vrcp.pop %v378
  %v381 = vmul.f32 %v378, %v380
  %v382 = vsub.f32 1.0, %v381
  %v383 = vmul.f32 %v380, %v382
  %v384 = vadd.f32 %v380, %v383
  %vm385 = vweird.f32 %v378
  %vm386 = vweird.f32 %v380
  %vm387 = vmor %vm385, %vm386
  %v388 = vsel %vm387, %v380, %v384
  %v389 = vand.u32 2147483647, %v378
  %vm390 = vcmp.eq.f32.partialorder %v389, 8.507059e+37
  %v391 = vand.u32 %v378, 2147483648
  %v392 = vor.u32 1.1754944e-38, %v391
  %v393 = vsel %vm390, %v392, %v388
  %v394 = vmul.f32 1.0, %v393
  %v395 = vrcp.pop %v379
  %v396 = vmul.f32 %v379, %v395
  %v397 = vsub.f32 1.0, %v396
  %v398 = vmul.f32 %v395, %v397
  %v399 = vadd.f32 %v395, %v398
  %vm400 = vweird.f32 %v379
  %vm401 = vweird.f32 %v395
  %vm402 = vmor %vm400, %vm401
  %v403 = vsel %vm402, %v395, %v399
  %v404 = vand.u32 2147483647, %v379
  %vm405 = vcmp.eq.f32.partialorder %v404, 8.507059e+37
  %v406 = vand.u32 %v379, 2147483648
  %v407 = vor.u32 1.1754944e-38, %v406
  %v408 = vsel %vm405, %v407, %v403
  %v409 = vmul.f32 1.0, %v408
  %v410 = vmul.f32 %v409, 2.0
  %v411 = vsub.f32 %v410, 1.0
  %v413 = vrot.slane %v315, 6
  %v415 = vmul.f32 %v394, %v413
  %v416 = vmul.f32 %v394, %v411
  %418 = vrot.lane.b32.xlu0 %v416, 64
  %v419 = vpop.permute.xlu0 %418
  %v421 = vadd.f32 %v415, %v419
  %v422 = vtanh.pop %v421
  %v423 = vmul.f32 %v409, %v422
  %v425 = vrot.slane %v423, 4
  %426 = vrot.lane.b32.xlu0 %v425, 64
  %v427 = vpop.permute.xlu0 %426
  %v428 = vsel %vm50, %v427, 0
  %430 = vmatpush.msra.mxu0 0.0
  %431 = vmatpush.msra.mxu0 0.0
  %432 = vmatpush.msra.mxu0 0.0
  %433 = vmatpush.msra.mxu0 0.0
  %434 = vmatpush.msra.mxu0 0.0
  %435 = vmatpush.msra.mxu0 0.0
  %436 = vmatpush.msra.mxu0 0.0
  %437 = vmatpush.msra.mxu0 0.0
  %438 = vmatpush.msra.mxu0 %v117
  %439 = vmatpush.msra.mxu0 %v115
  %440 = vmatpush.msra.mxu0 %v113
  %441 = vmatpush.msra.mxu0 %v111
  %442 = vmatpush.msra.mxu0 %v109
  %443 = vmatpush.msra.mxu0 %v107
  %444 = vmatpush.msra.mxu0 %v105
  %445 = vmatpush.msra.mxu0 %v103
  %446 = vmatmul.f32.gmra.mxu0 %v428
  %v447 = vpop.f32.mrf.mxu0
  %v448 = vadd.f32 0.0, %v447
  %449 = vdwg.mxu0
  %450 = vmatpush.msra.mxu0 0.0
  %451 = vmatpush.msra.mxu0 0.0
  %452 = vmatpush.msra.mxu0 0.0
  %453 = vmatpush.msra.mxu0 0.0
  %454 = vmatpush.msra.mxu0 0.0
  %455 = vmatpush.msra.mxu0 0.0
  %456 = vmatpush.msra.mxu0 0.0
  %457 = vmatpush.msra.mxu0 0.0
  %458 = vmatpush.msra.mxu0 %v118
  %459 = vmatpush.msra.mxu0 %v116
  %460 = vmatpush.msra.mxu0 %v114
  %461 = vmatpush.msra.mxu0 %v112
  %462 = vmatpush.msra.mxu0 %v110
  %463 = vmatpush.msra.mxu0 %v108
  %464 = vmatpush.msra.mxu0 %v106
  %465 = vmatpush.msra.mxu0 %v104
  %466 = vmatmul.f32.gmra.mxu0 %v428
  %v467 = vpop.f32.mrf.mxu0
  %v468 = vadd.f32 0.0, %v467
  %469 = vdwg.mxu0
  %v472 = vrot.slane %v448, 2
  %v473 = vrot.slane %v468, 2
  %v476 = vadd.f32 %v75, %v472
  %v477 = vadd.f32 %v98, %v473
  %v478 = vxor.u32 %v476, 2147483648
  %v479 = vxor.u32 %v477, 2147483648
  %v480 = vmul.f32 %v478, 1.442695
  %v481 = vpow.pop %v480
  %v482 = vmul.f32 %v479, 1.442695
  %v483 = vpow.pop %v482
  %v484 = vadd.f32 %v481, 1.0
  %v485 = vadd.f32 %v483, 1.0
  %v486 = vrcp.pop %v484
  %v487 = vmul.f32 %v484, %v486
  %v488 = vsub.f32 1.0, %v487
  %v489 = vmul.f32 %v486, %v488
  %v490 = vadd.f32 %v486, %v489
  %vm491 = vweird.f32 %v484
  %vm492 = vweird.f32 %v486
  %vm493 = vmor %vm491, %vm492
  %v494 = vsel %vm493, %v486, %v490
  %v495 = vand.u32 2147483647, %v484
  %vm496 = vcmp.eq.f32.partialorder %v495, 8.507059e+37
  %v497 = vand.u32 %v484, 2147483648
  %v498 = vor.u32 1.1754944e-38, %v497
  %v499 = vsel %vm496, %v498, %v494
  %v500 = vmul.f32 1.0, %v499
  %v501 = vrcp.pop %v485
  %v502 = vmul.f32 %v485, %v501
  %v503 = vsub.f32 1.0, %v502
  %v504 = vmul.f32 %v501, %v503
  %v505 = vadd.f32 %v501, %v504
  %vm506 = vweird.f32 %v485
  %vm507 = vweird.f32 %v501
  %vm508 = vmor %vm506, %vm507
  %v509 = vsel %vm508, %v501, %v505
  %v510 = vand.u32 2147483647, %v485
  %vm511 = vcmp.eq.f32.partialorder %v510, 8.507059e+37
  %v512 = vand.u32 %v485, 2147483648
  %v513 = vor.u32 1.1754944e-38, %v512
  %v514 = vsel %vm511, %v513, %v509
  %v515 = vmul.f32 1.0, %v514
  %v516 = vmul.f32 %v515, 2.0
  %v517 = vsub.f32 %v516, 1.0
  %v519 = vrot.slane %v421, 6
  %v521 = vmul.f32 %v500, %v519
  %v522 = vmul.f32 %v500, %v517
  %524 = vrot.lane.b32.xlu0 %v522, 64
  %v525 = vpop.permute.xlu0 %524
  %v527 = vadd.f32 %v521, %v525
  %v528 = vtanh.pop %v527
  %v529 = vmul.f32 %v515, %v528
  %v531 = vrot.slane %v529, 6
  %532 = vrot.lane.b32.xlu0 %v531, 64
  %v533 = vpop.permute.xlu0 %532
  %v534 = vsel %vm50, %v533, 0
  %536 = vmatpush.msra.mxu0 0.0
  %537 = vmatpush.msra.mxu0 0.0
  %538 = vmatpush.msra.mxu0 0.0
  %539 = vmatpush.msra.mxu0 0.0
  %540 = vmatpush.msra.mxu0 0.0
  %541 = vmatpush.msra.mxu0 0.0
  %542 = vmatpush.msra.mxu0 0.0
  %543 = vmatpush.msra.mxu0 0.0
  %544 = vmatpush.msra.mxu0 %v117
  %545 = vmatpush.msra.mxu0 %v115
  %546 = vmatpush.msra.mxu0 %v113
  %547 = vmatpush.msra.mxu0 %v111
  %548 = vmatpush.msra.mxu0 %v109
  %549 = vmatpush.msra.mxu0 %v107
  %550 = vmatpush.msra.mxu0 %v105
  %551 = vmatpush.msra.mxu0 %v103
  %552 = vmatmul.f32.gmra.mxu0 %v534
  %v553 = vpop.f32.mrf.mxu0
  %v554 = vadd.f32 0.0, %v553
  %555 = vdwg.mxu0
  %556 = vmatpush.msra.mxu0 0.0
  %557 = vmatpush.msra.mxu0 0.0
  %558 = vmatpush.msra.mxu0 0.0
  %559 = vmatpush.msra.mxu0 0.0
  %560 = vmatpush.msra.mxu0 0.0
  %561 = vmatpush.msra.mxu0 0.0
  %562 = vmatpush.msra.mxu0 0.0
  %563 = vmatpush.msra.mxu0 0.0
  %564 = vmatpush.msra.mxu0 %v118
  %565 = vmatpush.msra.mxu0 %v116
  %566 = vmatpush.msra.mxu0 %v114
  %567 = vmatpush.msra.mxu0 %v112
  %568 = vmatpush.msra.mxu0 %v110
  %569 = vmatpush.msra.mxu0 %v108
  %570 = vmatpush.msra.mxu0 %v106
  %571 = vmatpush.msra.mxu0 %v104
  %572 = vmatmul.f32.gmra.mxu0 %v534
  %v573 = vpop.f32.mrf.mxu0
  %v574 = vadd.f32 0.0, %v573
  %575 = vdwg.mxu0
  %v576 = vadd.f32 %v78, %v554
  %v577 = vadd.f32 %v101, %v574
  %v578 = vxor.u32 %v576, 2147483648
  %v579 = vxor.u32 %v577, 2147483648
  %v580 = vmul.f32 %v578, 1.442695
  %v581 = vpow.pop %v580
  %v582 = vmul.f32 %v579, 1.442695
  %v583 = vpow.pop %v582
  %v584 = vadd.f32 %v581, 1.0
  %v585 = vadd.f32 %v583, 1.0
  %v586 = vrcp.pop %v584
  %v587 = vmul.f32 %v584, %v586
  %v588 = vsub.f32 1.0, %v587
  %v589 = vmul.f32 %v586, %v588
  %v590 = vadd.f32 %v586, %v589
  %vm591 = vweird.f32 %v584
  %vm592 = vweird.f32 %v586
  %vm593 = vmor %vm591, %vm592
  %v594 = vsel %vm593, %v586, %v590
  %v595 = vand.u32 2147483647, %v584
  %vm596 = vcmp.eq.f32.partialorder %v595, 8.507059e+37
  %v597 = vand.u32 %v584, 2147483648
  %v598 = vor.u32 1.1754944e-38, %v597
  %v599 = vsel %vm596, %v598, %v594
  %v600 = vmul.f32 1.0, %v599
  %v601 = vrcp.pop %v585
  %v602 = vmul.f32 %v585, %v601
  %v603 = vsub.f32 1.0, %v602
  %v604 = vmul.f32 %v601, %v603
  %v605 = vadd.f32 %v601, %v604
  %vm606 = vweird.f32 %v585
  %vm607 = vweird.f32 %v601
  %vm608 = vmor %vm606, %vm607
  %v609 = vsel %vm608, %v601, %v605
  %v610 = vand.u32 2147483647, %v585
  %vm611 = vcmp.eq.f32.partialorder %v610, 8.507059e+37
  %v612 = vand.u32 %v585, 2147483648
  %v613 = vor.u32 1.1754944e-38, %v612
  %v614 = vsel %vm611, %v613, %v609
  %v615 = vmul.f32 1.0, %v614
  %v616 = vmul.f32 %v615, 2.0
  %v617 = vsub.f32 %v616, 1.0
  %v619 = vrot.slane %v527, 6
  %v621 = vmul.f32 %v600, %v619
  %v622 = vmul.f32 %v600, %v617
  %624 = vrot.lane.b32.xlu0 %v622, 64
  %v625 = vpop.permute.xlu0 %624
  %v627 = vadd.f32 %v621, %v625
  %v628 = vtanh.pop %v627
  %v629 = vmul.f32 %v615, %v628
  %631 = vrot.lane.b32.xlu0 %v629, 64
  %v632 = vpop.permute.xlu0 %631
  %v633 = vsel %vm50, %v632, 0
  %635 = vmatpush.msra.mxu0 0.0
  %636 = vmatpush.msra.mxu0 0.0
  %637 = vmatpush.msra.mxu0 0.0
  %638 = vmatpush.msra.mxu0 0.0
  %639 = vmatpush.msra.mxu0 0.0
  %640 = vmatpush.msra.mxu0 0.0
  %641 = vmatpush.msra.mxu0 0.0
  %642 = vmatpush.msra.mxu0 0.0
  %643 = vmatpush.msra.mxu0 %v117
  %644 = vmatpush.msra.mxu0 %v115
  %645 = vmatpush.msra.mxu0 %v113
  %646 = vmatpush.msra.mxu0 %v111
  %647 = vmatpush.msra.mxu0 %v109
  %648 = vmatpush.msra.mxu0 %v107
  %649 = vmatpush.msra.mxu0 %v105
  %650 = vmatpush.msra.mxu0 %v103
  %651 = vmatmul.f32.gmra.mxu0 %v633
  %v652 = vpop.f32.mrf.mxu0
  %v653 = vadd.f32 0.0, %v652
  %654 = vdwg.mxu0
  %655 = vmatpush.msra.mxu0 0.0
  %656 = vmatpush.msra.mxu0 0.0
  %657 = vmatpush.msra.mxu0 0.0
  %658 = vmatpush.msra.mxu0 0.0
  %659 = vmatpush.msra.mxu0 0.0
  %660 = vmatpush.msra.mxu0 0.0
  %661 = vmatpush.msra.mxu0 0.0
  %662 = vmatpush.msra.mxu0 0.0
  %663 = vmatpush.msra.mxu0 %v118
  %664 = vmatpush.msra.mxu0 %v116
  %665 = vmatpush.msra.mxu0 %v114
  %666 = vmatpush.msra.mxu0 %v112
  %667 = vmatpush.msra.mxu0 %v110
  %668 = vmatpush.msra.mxu0 %v108
  %669 = vmatpush.msra.mxu0 %v106
  %670 = vmatpush.msra.mxu0 %v104
  %671 = vmatmul.f32.gmra.mxu0 %v633
  %v672 = vpop.f32.mrf.mxu0
  %v673 = vadd.f32 0.0, %v672
  %674 = vdwg.mxu0
  %v677 = vrot.slane %v653, 6
  %v678 = vrot.slane %v673, 6
  %v681 = vadd.f32 %v78, %v677
  %v682 = vadd.f32 %v101, %v678
  %v683 = vxor.u32 %v681, 2147483648
  %v684 = vxor.u32 %v682, 2147483648
  %v685 = vmul.f32 %v683, 1.442695
  %v686 = vpow.pop %v685
  %v687 = vmul.f32 %v684, 1.442695
  %v688 = vpow.pop %v687
  %v689 = vadd.f32 %v686, 1.0
  %v690 = vadd.f32 %v688, 1.0
  %v691 = vrcp.pop %v689
  %v692 = vmul.f32 %v689, %v691
  %v693 = vsub.f32 1.0, %v692
  %v694 = vmul.f32 %v691, %v693
  %v695 = vadd.f32 %v691, %v694
  %vm696 = vweird.f32 %v689
  %vm697 = vweird.f32 %v691
  %vm698 = vmor %vm696, %vm697
  %v699 = vsel %vm698, %v691, %v695
  %v700 = vand.u32 2147483647, %v689
  %vm701 = vcmp.eq.f32.partialorder %v700, 8.507059e+37
  %v702 = vand.u32 %v689, 2147483648
  %v703 = vor.u32 1.1754944e-38, %v702
  %v704 = vsel %vm701, %v703, %v699
  %v705 = vmul.f32 1.0, %v704
  %v706 = vrcp.pop %v690
  %v707 = vmul.f32 %v690, %v706
  %v708 = vsub.f32 1.0, %v707
  %v709 = vmul.f32 %v706, %v708
  %v710 = vadd.f32 %v706, %v709
  %vm711 = vweird.f32 %v690
  %vm712 = vweird.f32 %v706
  %vm713 = vmor %vm711, %vm712
  %v714 = vsel %vm713, %v706, %v710
  %v715 = vand.u32 2147483647, %v690
  %vm716 = vcmp.eq.f32.partialorder %v715, 8.507059e+37
  %v717 = vand.u32 %v690, 2147483648
  %v718 = vor.u32 1.1754944e-38, %v717
  %v719 = vsel %vm716, %v718, %v714
  %v720 = vmul.f32 1.0, %v719
  %v721 = vmul.f32 %v720, 2.0
  %v722 = vsub.f32 %v721, 1.0
  %v724 = vrot.slane %v627, 6
  %v726 = vmul.f32 %v705, %v724
  %v727 = vmul.f32 %v705, %v722
  %729 = vrot.lane.b32.xlu0 %v727, 64
  %v730 = vpop.permute.xlu0 %729
  %v732 = vadd.f32 %v726, %v730
  %v733 = vtanh.pop %v732
  %v734 = vmul.f32 %v720, %v733
  %v736 = vrot.slane %v734, 2
  %737 = vrot.lane.b32.xlu0 %v736, 64
  %v738 = vpop.permute.xlu0 %737
  %v739 = vsel %vm50, %v738, 0
  %741 = vmatpush.msra.mxu0 0.0
  %742 = vmatpush.msra.mxu0 0.0
  %743 = vmatpush.msra.mxu0 0.0
  %744 = vmatpush.msra.mxu0 0.0
  %745 = vmatpush.msra.mxu0 0.0
  %746 = vmatpush.msra.mxu0 0.0
  %747 = vmatpush.msra.mxu0 0.0
  %748 = vmatpush.msra.mxu0 0.0
  %749 = vmatpush.msra.mxu0 %v117
  %750 = vmatpush.msra.mxu0 %v115
  %751 = vmatpush.msra.mxu0 %v113
  %752 = vmatpush.msra.mxu0 %v111
  %753 = vmatpush.msra.mxu0 %v109
  %754 = vmatpush.msra.mxu0 %v107
  %755 = vmatpush.msra.mxu0 %v105
  %756 = vmatpush.msra.mxu0 %v103
  %757 = vmatmul.f32.gmra.mxu0 %v739
  %v758 = vpop.f32.mrf.mxu0
  %v759 = vadd.f32 0.0, %v758
  %760 = vdwg.mxu0
  %761 = vmatpush.msra.mxu0 0.0
  %762 = vmatpush.msra.mxu0 0.0
  %763 = vmatpush.msra.mxu0 0.0
  %764 = vmatpush.msra.mxu0 0.0
  %765 = vmatpush.msra.mxu0 0.0
  %766 = vmatpush.msra.mxu0 0.0
  %767 = vmatpush.msra.mxu0 0.0
  %768 = vmatpush.msra.mxu0 0.0
  %769 = vmatpush.msra.mxu0 %v118
  %770 = vmatpush.msra.mxu0 %v116
  %771 = vmatpush.msra.mxu0 %v114
  %772 = vmatpush.msra.mxu0 %v112
  %773 = vmatpush.msra.mxu0 %v110
  %774 = vmatpush.msra.mxu0 %v108
  %775 = vmatpush.msra.mxu0 %v106
  %776 = vmatpush.msra.mxu0 %v104
  %777 = vmatmul.f32.gmra.mxu0 %v739
  %v778 = vpop.f32.mrf.mxu0
  %v779 = vadd.f32 0.0, %v778
  %780 = vdwg.mxu0
  %v783 = vrot.slane %v759, 4
  %v784 = vrot.slane %v779, 4
  %v787 = vadd.f32 %v78, %v783
  %v788 = vadd.f32 %v101, %v784
  %v789 = vxor.u32 %v787, 2147483648
  %v790 = vxor.u32 %v788, 2147483648
  %v791 = vmul.f32 %v789, 1.442695
  %v792 = vpow.pop %v791
  %v793 = vmul.f32 %v790, 1.442695
  %v794 = vpow.pop %v793
  %v795 = vadd.f32 %v792, 1.0
  %v796 = vadd.f32 %v794, 1.0
  %v797 = vrcp.pop %v795
  %v798 = vmul.f32 %v795, %v797
  %v799 = vsub.f32 1.0, %v798
  %v800 = vmul.f32 %v797, %v799
  %v801 = vadd.f32 %v797, %v800
  %vm802 = vweird.f32 %v795
  %vm803 = vweird.f32 %v797
  %vm804 = vmor %vm802, %vm803
  %v805 = vsel %vm804, %v797, %v801
  %v806 = vand.u32 2147483647, %v795
  %vm807 = vcmp.eq.f32.partialorder %v806, 8.507059e+37
  %v808 = vand.u32 %v795, 2147483648
  %v809 = vor.u32 1.1754944e-38, %v808
  %v810 = vsel %vm807, %v809, %v805
  %v811 = vmul.f32 1.0, %v810
  %v812 = vrcp.pop %v796
  %v813 = vmul.f32 %v796, %v812
  %v814 = vsub.f32 1.0, %v813
  %v815 = vmul.f32 %v812, %v814
  %v816 = vadd.f32 %v812, %v815
  %vm817 = vweird.f32 %v796
  %vm818 = vweird.f32 %v812
  %vm819 = vmor %vm817, %vm818
  %v820 = vsel %vm819, %v812, %v816
  %v821 = vand.u32 2147483647, %v796
  %vm822 = vcmp.eq.f32.partialorder %v821, 8.507059e+37
  %v823 = vand.u32 %v796, 2147483648
  %v824 = vor.u32 1.1754944e-38, %v823
  %v825 = vsel %vm822, %v824, %v820
  %v826 = vmul.f32 1.0, %v825
  %v827 = vmul.f32 %v826, 2.0
  %v828 = vsub.f32 %v827, 1.0
  %v830 = vrot.slane %v732, 6
  %v832 = vmul.f32 %v811, %v830
  %v833 = vmul.f32 %v811, %v828
  %835 = vrot.lane.b32.xlu0 %v833, 64
  %v836 = vpop.permute.xlu0 %835
  %v838 = vadd.f32 %v832, %v836
  %v839 = vtanh.pop %v838
  %v840 = vmul.f32 %v826, %v839
  %v842 = vrot.slane %v840, 4
  %843 = vrot.lane.b32.xlu0 %v842, 64
  %v844 = vpop.permute.xlu0 %843
  %v845 = vsel %vm50, %v844, 0
  %847 = vmatpush.msra.mxu0 0.0
  %848 = vmatpush.msra.mxu0 0.0
  %849 = vmatpush.msra.mxu0 0.0
  %850 = vmatpush.msra.mxu0 0.0
  %851 = vmatpush.msra.mxu0 0.0
  %852 = vmatpush.msra.mxu0 0.0
  %853 = vmatpush.msra.mxu0 0.0
  %854 = vmatpush.msra.mxu0 0.0
  %855 = vmatpush.msra.mxu0 %v117
  %856 = vmatpush.msra.mxu0 %v115
  %857 = vmatpush.msra.mxu0 %v113
  %858 = vmatpush.msra.mxu0 %v111
  %859 = vmatpush.msra.mxu0 %v109
  %860 = vmatpush.msra.mxu0 %v107
  %861 = vmatpush.msra.mxu0 %v105
  %862 = vmatpush.msra.mxu0 %v103
  %863 = vmatmul.f32.gmra.mxu0 %v845
  %v864 = vpop.f32.mrf.mxu0
  %v865 = vadd.f32 0.0, %v864
  %866 = vdwg.mxu0
  %867 = vmatpush.msra.mxu0 0.0
  %868 = vmatpush.msra.mxu0 0.0
  %869 = vmatpush.msra.mxu0 0.0
  %870 = vmatpush.msra.mxu0 0.0
  %871 = vmatpush.msra.mxu0 0.0
  %872 = vmatpush.msra.mxu0 0.0
  %873 = vmatpush.msra.mxu0 0.0
  %874 = vmatpush.msra.mxu0 0.0
  %875 = vmatpush.msra.mxu0 %v118
  %876 = vmatpush.msra.mxu0 %v116
  %877 = vmatpush.msra.mxu0 %v114
  %878 = vmatpush.msra.mxu0 %v112
  %879 = vmatpush.msra.mxu0 %v110
  %880 = vmatpush.msra.mxu0 %v108
  %881 = vmatpush.msra.mxu0 %v106
  %882 = vmatpush.msra.mxu0 %v104
  %883 = vmatmul.f32.gmra.mxu0 %v845
  %v884 = vpop.f32.mrf.mxu0
  %v885 = vadd.f32 0.0, %v884
  %886 = vdwg.mxu0
  %v889 = vrot.slane %v865, 2
  %v890 = vrot.slane %v885, 2
  %v893 = vadd.f32 %v78, %v889
  %v894 = vadd.f32 %v101, %v890
  %v895 = vxor.u32 %v893, 2147483648
  %v896 = vxor.u32 %v894, 2147483648
  %v897 = vmul.f32 %v895, 1.442695
  %v898 = vpow.pop %v897
  %v899 = vmul.f32 %v896, 1.442695
  %v900 = vpow.pop %v899
  %v901 = vadd.f32 %v898, 1.0
  %v902 = vadd.f32 %v900, 1.0
  %v903 = vrcp.pop %v901
  %v904 = vmul.f32 %v901, %v903
  %v905 = vsub.f32 1.0, %v904
  %v906 = vmul.f32 %v903, %v905
  %v907 = vadd.f32 %v903, %v906
  %vm908 = vweird.f32 %v901
  %vm909 = vweird.f32 %v903
  %vm910 = vmor %vm908, %vm909
  %v911 = vsel %vm910, %v903, %v907
  %v912 = vand.u32 2147483647, %v901
  %vm913 = vcmp.eq.f32.partialorder %v912, 8.507059e+37
  %v914 = vand.u32 %v901, 2147483648
  %v915 = vor.u32 1.1754944e-38, %v914
  %v916 = vsel %vm913, %v915, %v911
  %v917 = vmul.f32 1.0, %v916
  %v918 = vrcp.pop %v902
  %v919 = vmul.f32 %v902, %v918
  %v920 = vsub.f32 1.0, %v919
  %v921 = vmul.f32 %v918, %v920
  %v922 = vadd.f32 %v918, %v921
  %vm923 = vweird.f32 %v902
  %vm924 = vweird.f32 %v918
  %vm925 = vmor %vm923, %vm924
  %v926 = vsel %vm925, %v918, %v922
  %v927 = vand.u32 2147483647, %v902
  %vm928 = vcmp.eq.f32.partialorder %v927, 8.507059e+37
  %v929 = vand.u32 %v902, 2147483648
  %v930 = vor.u32 1.1754944e-38, %v929
  %v931 = vsel %vm928, %v930, %v926
  %v932 = vmul.f32 1.0, %v931
  %v933 = vmul.f32 %v932, 2.0
  %v934 = vsub.f32 %v933, 1.0
  %v936 = vrot.slane %v838, 6
  %v938 = vmul.f32 %v917, %v936
  %v939 = vmul.f32 %v917, %v934
  %941 = vrot.lane.b32.xlu0 %v939, 64
  %v942 = vpop.permute.xlu0 %941
  %v944 = vadd.f32 %v938, %v942
  %v945 = vtanh.pop %v944
  %v946 = vmul.f32 %v932, %v945
  %vm947 = vcmask 1041408
  %v948 = vsel %vm947, %v212, %v317
  %vm949 = vcmask 1043456
  %v950 = vsel %vm949, %v948, %v423
  %vm951 = vcmask 1045504
  %v952 = vsel %vm951, %v950, %v529
  %v953 = vsel %vm947, %v629, %v734
  %v954 = vsel %vm949, %v953, %v840
  %v955 = vsel %vm951, %v954, %v946
  %v957 = vrot.slane %v946, 6
  %v959 = vrot.slane %v840, 2
  %v961 = vrot.slane %v734, 6
  %v963 = vrot.slane %v629, 2
  %v966 = vrot.slane %v423, 2
  %v968 = vrot.slane %v317, 6
  %v970 = vrot.slane %v212, 2
  %v972 = vsel %vm947, %v957, %v959
  %v973 = vsel %vm949, %v972, %v961
  %v974 = vsel %vm951, %v973, %v963
  %v975 = vsel %vm947, %v531, %v966
  %v976 = vsel %vm949, %v975, %v968
  %v977 = vsel %vm951, %v976, %v970
  %v978 = vld [vmem:[%s4] sm:$0xff]
  %v979 = vld [vmem:[%s4 + $0x8] sm:$0xff]
  %v980 = vld [vmem:[%s4 + $0x10] sm:$0xff]
  %v981 = vld [vmem:[%s4 + $0x18] sm:$0xff]
  %v982 = vld [vmem:[%s5] sm:$0xff]
  %v983 = vld [vmem:[%s5 + $0x8] sm:$0xff]
  %v984 = vld [vmem:[%s5 + $0x10] sm:$0xff]
  %v985 = vld [vmem:[%s5 + $0x18] sm:$0xff]
  %988 = vrot.lane.b32.xlu0 %v974, 32
  %v989 = vpop.permute.xlu0 %988
  %990 = vrot.lane.b32.xlu0 %v977, 32
  %v991 = vpop.permute.xlu0 %990
  %vm992 = vcmask 261120
  %v993 = vsel %vm992, %v989, 0
  %v995 = vsel %vm992, %v991, 0
  %997 = vmatpush.msra.mxu0 0.0
  %998 = vmatpush.msra.mxu0 0.0
  %999 = vmatpush.msra.mxu0 0.0
  %1000 = vmatpush.msra.mxu0 0.0
  %1001 = vmatpush.msra.mxu0 0.0
  %1002 = vmatpush.msra.mxu0 0.0
  %1003 = vmatpush.msra.mxu0 0.0
  %1004 = vmatpush.msra.mxu0 0.0
  %1005 = vmatpush.msra.mxu0 0.0
  %1006 = vmatpush.msra.mxu0 0.0
  %1007 = vmatpush.msra.mxu0 0.0
  %1008 = vmatpush.msra.mxu0 0.0
  %1009 = vmatpush.msra.mxu0 %v985
  %1010 = vmatpush.msra.mxu0 %v984
  %1011 = vmatpush.msra.mxu0 %v983
  %1012 = vmatpush.msra.mxu0 %v982
  %1013 = vmatmul.f32.gmra.mxu0 %v993
  %v1014 = vpop.f32.mrf.mxu0
  %v1015 = vadd.f32 0.0, %v1014
  %1016 = vmatmul.f32.gmra.mxu0 %v995
  %v1017 = vpop.f32.mrf.mxu0
  %v1018 = vadd.f32 0.0, %v1017
  %1019 = vdwg.mxu0
  %1022 = vrot.lane.b32.xlu0 %v952, 64
  %v1023 = vpop.permute.xlu0 %1022
  %1024 = vrot.lane.b32.xlu0 %v955, 64
  %v1025 = vpop.permute.xlu0 %1024
  %v1026 = vsel %vm992, %v1023, 0
  %v1028 = vsel %vm992, %v1025, 0
  %1030 = vmatpush.msra.mxu0 0.0
  %1031 = vmatpush.msra.mxu0 0.0
  %1032 = vmatpush.msra.mxu0 0.0
  %1033 = vmatpush.msra.mxu0 0.0
  %1034 = vmatpush.msra.mxu0 0.0
  %1035 = vmatpush.msra.mxu0 0.0
  %1036 = vmatpush.msra.mxu0 0.0
  %1037 = vmatpush.msra.mxu0 0.0
  %1038 = vmatpush.msra.mxu0 0.0
  %1039 = vmatpush.msra.mxu0 0.0
  %1040 = vmatpush.msra.mxu0 0.0
  %1041 = vmatpush.msra.mxu0 0.0
  %1042 = vmatpush.msra.mxu0 %v981
  %1043 = vmatpush.msra.mxu0 %v980
  %1044 = vmatpush.msra.mxu0 %v979
  %1045 = vmatpush.msra.mxu0 %v978
  %1046 = vmatmul.f32.gmra.mxu0 %v1026
  %v1047 = vpop.f32.mrf.mxu0
  %v1048 = vadd.f32 %v1015, %v1047
  %1049 = vmatmul.f32.gmra.mxu0 %v1028
  %v1050 = vpop.f32.mrf.mxu0
  %v1051 = vadd.f32 %v1018, %v1050
  %1052 = vdwg.mxu0
  %v1053 = vld [vmem:[%s6] sm:$0x1]
  %v1055 = vperm.slane %v1053, 0
  %v1057 = vadd.f32 %v1048, %v1055
  %v1058 = vadd.f32 %v1051, %v1055
  %vm1059 = vcmask 130048
  %1060 = vst.msk [vmem:[%s7] sm:$0xff] %vm1059, %v1057
  %1061 = vst.msk [vmem:[%s7 + $0x8] sm:$0xff] %vm1059, %v1058
  // Predicated region
  $region30: #{rnn_forward.1} parent=0 // pred_check
    _
  $region31: #{rnn_forward.1} parent=0 // pred_check_branch
    %1063 = sbr.rel (0) target = $region33
  $region32: #{rnn_forward.1} parent=0 // pred_region
    _
  $region33: #{rnn_forward.1} parent=0 // pred_fallthru
    _
  // Predicated region
  $region34: #{rnn_forward.1} parent=0 // pred_check
    _
  $region35: #{rnn_forward.1} parent=0 // pred_check_branch
    %1065 = sbr.rel (0) target = $region37
  $region36: #{rnn_forward.1} parent=0 // pred_region
    _
  $region37: #{rnn_forward.1} parent=0 // pred_fallthru
    _

</llo_original>
